<compile_context>
chip_gen: v7x
topology: tpu7x:2x2x1
jax: 0.10.0
libtpu: 0.0.40
codegen_flags: <defaults>
</compile_context>

<pallas_src>
import jax
import jax.numpy as jnp
from jax import lax
from jax.experimental import pallas as pl
from jax.experimental.pallas import tpu as pltpu


def mnist_block_kernel(x_ref, sb_ref, w_ref, o_ref, pad_ref):
    # x_ref  : (1, H, W*Cin)        flattened NHWC input, one batch element
    # sb_ref : (2, W*Cin)           row 0 = BN scale (tiled over W), row 1 = BN shift
    # w_ref  : (9*W*Cin, W*Cout)    block-structured im2col weight matrix
    # o_ref  : (1, H, W*Cout)       lane-dense output slab (W*Cout == 128 here)
    # pad_ref: (H+2, (W+2)*Cin)     VMEM scratch: zero-padded post-ReLU activation
    H = x_ref.shape[1]
    WC_in = x_ref.shape[2]                       # W * Cin
    Cin = (pad_ref.shape[1] - WC_in) // 2        # (W+2)*Cin - W*Cin = 2*Cin
    W = WC_in // Cin

    # Zero the whole padded scratch every step.  (Zeroing only at program_id==0
    # would be wrong on multi-core chips: with "parallel" grid semantics each
    # TensorCore has its own scratch and may never execute step 0.  The buffer
    # is ~3 vregs, so this costs almost nothing.)
    pad_ref[...] = jnp.zeros_like(pad_ref)

    # Fused BatchNorm (scale/shift) + ReLU on the VPU, written into the interior
    # of the padded scratch.  The halo stays exactly zero -> correct conv padding.
    s = sb_ref[0:1, :]                           # (1, W*Cin)
    b = sb_ref[1:2, :]                           # (1, W*Cin)
    a = jnp.maximum(x_ref[0] * s + b, 0.0)       # (H, W*Cin)
    pad_ref[1:H + 1, Cin:Cin + WC_in] = a.astype(pad_ref.dtype)

    # im2col: for tap (dy, dx) the patch is a CONTIGUOUS slab of the flattened
    # padded buffer: rows dy:dy+H, cols dx*Cin : dx*Cin + W*Cin.  Concatenate the
    # 9 slabs along the lane axis -> (H, 9*W*Cin), then a single MXU matmul
    # produces the (H, W*Cout) output slab directly in its store layout.
    slabs = [pad_ref[dy:dy + H, dx * Cin: dx * Cin + WC_in]
             for dy in range(3) for dx in range(3)]
    patch = jnp.concatenate(slabs, axis=1)       # (H, 9*W*Cin)

    o_ref[0] = jnp.dot(patch, w_ref[...],
                       preferred_element_type=jnp.float32).astype(o_ref.dtype)


def mnist_block_forward(x_nchw, gamma, beta, w_oihw, eps=1e-5):
    """Forward pass of MNISTBlock(in_planes, planes, stride=1) on NCHW input."""
    # TODO(synk): stride > 1 not implemented (module default stride=1 is used).
    N, Cin, H, W = x_nchw.shape
    Cout = w_oihw.shape[0]

    # Training-mode BatchNorm2d (fresh module): per-channel batch mean / biased
    # variance over (N, H, W), folded into a per-channel scale/shift.
    mean = jnp.mean(x_nchw, axis=(0, 2, 3))
    var = jnp.var(x_nchw, axis=(0, 2, 3))
    scale = gamma / jnp.sqrt(var + eps)
    bias = beta - mean * scale

    # NHWC with W and C flattened together: (N, H, W*Cin).
    x_flat = jnp.transpose(x_nchw, (0, 2, 3, 1)).reshape(N, H, W * Cin)

    # Scale/shift tiled over W to match the flattened lane layout, packed into a
    # single (2, W*Cin) array (one small VMEM tile instead of two).
    sb = jnp.stack([jnp.tile(scale, W), jnp.tile(bias, W)], axis=0)

    # Block-structured im2col weight matrix (built once, outside the kernel):
    #   rows indexed by (tap, w, cin), cols by (w', cout); block-diagonal over w
    #   within each tap, i.e. kron(I_W, w_hwio[dy, dx]).
    w_hwio = jnp.transpose(w_oihw, (2, 3, 1, 0)).astype(jnp.float32)  # (3,3,Cin,Cout)
    eye_w = jnp.eye(W, dtype=jnp.float32)
    wmat = jnp.concatenate(
        [jnp.kron(eye_w, w_hwio[dy, dx]) for dy in range(3) for dx in range(3)],
        axis=0)                                                       # (9*W*Cin, W*Cout)

    out_flat = pl.pallas_call(
        mnist_block_kernel,
        out_shape=jax.ShapeDtypeStruct((N, H, W * Cout), x_nchw.dtype),
        grid=(N,),
        in_specs=[
            pl.BlockSpec((1, H, W * Cin), lambda n: (n, 0, 0)),
            pl.BlockSpec((2, W * Cin), lambda n: (0, 0)),
            pl.BlockSpec((9 * W * Cin, W * Cout), lambda n: (0, 0)),
        ],
        out_specs=pl.BlockSpec((1, H, W * Cout), lambda n: (n, 0, 0)),
        scratch_shapes=[pltpu.VMEM((H + 2, (W + 2) * Cin), jnp.float32)],
        compiler_params=pltpu.CompilerParams(
            dimension_semantics=("parallel",)),
    )(x_flat, sb, wmat)

    # (N, H, W*Cout) -> (N, H, W, Cout) -> NCHW.  Pure layout plumbing.
    return jnp.transpose(out_flat.reshape(N, H, W, Cout), (0, 3, 1, 2))


def reference_forward(x, gamma, beta, w, eps=1e-5):
    """Pure-JAX reference matching PyTorch semantics (NCHW / OIHW)."""
    mean = jnp.mean(x, axis=(0, 2, 3), keepdims=True)
    var = jnp.var(x, axis=(0, 2, 3), keepdims=True)
    xn = (x - mean) / jnp.sqrt(var + eps)
    a = jnp.maximum(gamma[None, :, None, None] * xn +
                    beta[None, :, None, None], 0.0)
    return lax.conv_general_dilated(
        a, w, window_strides=(1, 1), padding="SAME",
        dimension_numbers=("NCHW", "OIHW", "NCHW"),
        precision=lax.Precision.HIGHEST)


if __name__ == "__main__":
    N, IN_PLANES, PLANES, H, W = 2, 4, 8, 16, 16

    key = jax.random.PRNGKey(0)
    kx, kw, kg, kb = jax.random.split(key, 4)

    x = jax.random.normal(kx, (N, IN_PLANES, H, W), dtype=jnp.float32)
    # Conv2d(in_planes, planes, 3, bias=False) weight: (planes, in_planes, 3, 3)
    w = jax.random.normal(kw, (PLANES, IN_PLANES, 3, 3), dtype=jnp.float32) * 0.1
    # BatchNorm2d affine params (non-trivial but deterministic)
    gamma = 1.0 + 0.1 * jax.random.normal(kg, (IN_PLANES,), dtype=jnp.float32)
    beta = 0.1 * jax.random.normal(kb, (IN_PLANES,), dtype=jnp.float32)

    out = jax.block_until_ready(mnist_block_forward(x, gamma, beta, w))
    ref = jax.block_until_ready(reference_forward(x, gamma, beta, w))

    assert out.shape == (N, PLANES, H, W), out.shape
    if not bool(jnp.allclose(out, ref, atol=2e-3, rtol=2e-3)):
        max_err = float(jnp.max(jnp.abs(out - ref)))
        raise AssertionError(f"Pallas kernel mismatch vs reference, max_err={max_err}")

    print("KERNEL_OK")
</pallas_src>

<mosaic_0001>
module attributes {stable_mosaic.version = 11 : i64} {
  func.func @mnist_block_kernel(%arg0: i32, %arg1: memref<1x16x64xf32, #tpu.memory_space<vmem>>, %arg2: memref<2x64xf32, #tpu.memory_space<vmem>>, %arg3: memref<576x128xf32, #tpu.memory_space<vmem>>, %arg4: memref<1x16x128xf32, #tpu.memory_space<vmem>>, %arg5: memref<18x72xf32, #tpu.memory_space<vmem>>) attributes {dimension_semantics = [#tpu.dimension_semantics<parallel>], iteration_bounds = array<i64: 2>, scalar_prefetch = 0 : i64, scratch_operands = 1 : i64, tpu.core_type = #tpu.core_type<tc>, window_params = [{transform_indices = @transform_0, window_bounds = array<i64: 1, 16, 64>}, {pipeline_mode = #tpu.pipeline_mode<synchronous>, transform_indices = @transform_1, window_bounds = array<i64: 2, 64>}, {pipeline_mode = #tpu.pipeline_mode<synchronous>, transform_indices = @transform_2, window_bounds = array<i64: 576, 128>}, {transform_indices = @transform_3, window_bounds = array<i64: 1, 16, 128>}]} {
    %cst = arith.constant 0.000000e+00 : f32
    %0 = vector.broadcast %cst : f32 to vector<18x72xf32>
    %c0 = arith.constant 0 : index
    %c0_0 = arith.constant 0 : index
    %1 = vector.load %arg5[%c0, %c0_0] : memref<18x72xf32, #tpu.memory_space<vmem>>, vector<18x72xf32>
    tpu.vector_store %arg5[%c0, %c0_0], %0 {strides = array<i32>} : memref<18x72xf32, #tpu.memory_space<vmem>>, vector<18x72xf32>,
    %c0_1 = arith.constant 0 : index
    %c0_2 = arith.constant 0 : index
    %2 = vector.load %arg2[%c0_1, %c0_2] : memref<2x64xf32, #tpu.memory_space<vmem>>, vector<1x64xf32>
    %c1 = arith.constant 1 : index
    %c0_3 = arith.constant 0 : index
    %3 = vector.load %arg2[%c1, %c0_3] : memref<2x64xf32, #tpu.memory_space<vmem>>, vector<1x64xf32>
    %c0_4 = arith.constant 0 : index
    %c0_5 = arith.constant 0 : index
    %c0_6 = arith.constant 0 : index
    %4 = vector.load %arg1[%c0_4, %c0_5, %c0_6] : memref<1x16x64xf32, #tpu.memory_space<vmem>>, vector<1x16x64xf32>
    %5 = vector.shape_cast %4 : vector<1x16x64xf32> to vector<16x64xf32>
    %6 = vector.broadcast %2 : vector<1x64xf32> to vector<16x64xf32>
    %7 = arith.mulf %5, %6 : vector<16x64xf32>
    %8 = vector.broadcast %3 : vector<1x64xf32> to vector<16x64xf32>
    %9 = arith.addf %7, %8 : vector<16x64xf32>
    %cst_7 = arith.constant 0.000000e+00 : f32
    %10 = vector.broadcast %cst_7 : f32 to vector<16x64xf32>
    %11 = arith.maximumf %9, %10 : vector<16x64xf32>
    %c1_8 = arith.constant 1 : index
    %c4 = arith.constant 4 : index
    %12 = vector.load %arg5[%c1_8, %c4] : memref<18x72xf32, #tpu.memory_space<vmem>>, vector<16x64xf32>
    tpu.vector_store %arg5[%c1_8, %c4], %11 {strides = array<i32>} : memref<18x72xf32, #tpu.memory_space<vmem>>, vector<16x64xf32>,
    %c0_9 = arith.constant 0 : index
    %c0_10 = arith.constant 0 : index
    %13 = vector.load %arg5[%c0_9, %c0_10] : memref<18x72xf32, #tpu.memory_space<vmem>>, vector<16x64xf32>
    %c0_11 = arith.constant 0 : index
    %c4_12 = arith.constant 4 : index
    %14 = vector.load %arg5[%c0_11, %c4_12] : memref<18x72xf32, #tpu.memory_space<vmem>>, vector<16x64xf32>
    %c0_13 = arith.constant 0 : index
    %c8 = arith.constant 8 : index
    %15 = vector.load %arg5[%c0_13, %c8] : memref<18x72xf32, #tpu.memory_space<vmem>>, vector<16x64xf32>
    %c1_14 = arith.constant 1 : index
    %c0_15 = arith.constant 0 : index
    %16 = vector.load %arg5[%c1_14, %c0_15] : memref<18x72xf32, #tpu.memory_space<vmem>>, vector<16x64xf32>
    %c1_16 = arith.constant 1 : index
    %c4_17 = arith.constant 4 : index
    %17 = vector.load %arg5[%c1_16, %c4_17] : memref<18x72xf32, #tpu.memory_space<vmem>>, vector<16x64xf32>
    %c1_18 = arith.constant 1 : index
    %c8_19 = arith.constant 8 : index
    %18 = vector.load %arg5[%c1_18, %c8_19] : memref<18x72xf32, #tpu.memory_space<vmem>>, vector<16x64xf32>
    %c2 = arith.constant 2 : index
    %c0_20 = arith.constant 0 : index
    %19 = vector.load %arg5[%c2, %c0_20] : memref<18x72xf32, #tpu.memory_space<vmem>>, vector<16x64xf32>
    %c2_21 = arith.constant 2 : index
    %c4_22 = arith.constant 4 : index
    %20 = vector.load %arg5[%c2_21, %c4_22] : memref<18x72xf32, #tpu.memory_space<vmem>>, vector<16x64xf32>
    %c2_23 = arith.constant 2 : index
    %c8_24 = arith.constant 8 : index
    %21 = vector.load %arg5[%c2_23, %c8_24] : memref<18x72xf32, #tpu.memory_space<vmem>>, vector<16x64xf32>
    %22 = tpu.concatenate %13, %14, %15, %16, %17, %18, %19, %20, %21 in 1 : vector<16x64xf32>, vector<16x64xf32>, vector<16x64xf32>, vector<16x64xf32>, vector<16x64xf32>, vector<16x64xf32>, vector<16x64xf32>, vector<16x64xf32>, vector<16x64xf32> -> vector<16x576xf32>
    %c0_25 = arith.constant 0 : index
    %c0_26 = arith.constant 0 : index
    %23 = vector.load %arg3[%c0_25, %c0_26] : memref<576x128xf32, #tpu.memory_space<vmem>>, vector<576x128xf32>
    %cst_27 = arith.constant dense<0.000000e+00> : vector<16x128xf32>
    %24 = tpu.matmul %22, %23, %cst_27 {dimension_numbers = #tpu.dot_dimension_numbers<[1], [0], [0], [1], [0, 0, 1, 1], [], []>} : vector<16x576xf32>, vector<576x128xf32>, vector<16x128xf32> -> vector<16x128xf32>
    %c0_28 = arith.constant 0 : index
    %c0_29 = arith.constant 0 : index
    %c0_30 = arith.constant 0 : index
    %25 = vector.load %arg4[%c0_28, %c0_29, %c0_30] : memref<1x16x128xf32, #tpu.memory_space<vmem>>, vector<1x16x128xf32>
    %26 = vector.shape_cast %25 : vector<1x16x128xf32> to vector<16x128xf32>
    %27 = vector.shape_cast %24 : vector<16x128xf32> to vector<1x16x128xf32>
    tpu.vector_store %arg4[%c0_28, %c0_29, %c0_30], %27 {strides = array<i32>} : memref<1x16x128xf32, #tpu.memory_space<vmem>>, vector<1x16x128xf32>,
    return
  }
  func.func @transform_0(%arg0: i32) -> (i32, i32, i32) {
    %c0_i32 = arith.constant 0 : i32
    %c0_i32_0 = arith.constant 0 : i32
    %c0_i32_1 = arith.constant 0 : i32
    return %arg0, %c0_i32, %c0_i32_0 : i32, i32, i32
  }
  func.func @transform_1(%arg0: i32) -> (i32, i32) {
    %c0_i32 = arith.constant 0 : i32
    %c0_i32_0 = arith.constant 0 : i32
    %c0_i32_1 = arith.constant 0 : i32
    return %c0_i32, %c0_i32_0 : i32, i32
  }
  func.func @transform_2(%arg0: i32) -> (i32, i32) {
    %c0_i32 = arith.constant 0 : i32
    %c0_i32_0 = arith.constant 0 : i32
    %c0_i32_1 = arith.constant 0 : i32
    return %c0_i32, %c0_i32_0 : i32, i32
  }
  func.func @transform_3(%arg0: i32) -> (i32, i32, i32) {
    %c0_i32 = arith.constant 0 : i32
    %c0_i32_0 = arith.constant 0 : i32
    %c0_i32_1 = arith.constant 0 : i32
    return %arg0, %c0_i32, %c0_i32_0 : i32, i32, i32
  }
}

</mosaic_0001>

<llo_original>
// kernel: tpu_custom_call.1
$region0: #{tpu_custom_call.1}
  #allocation0 [shape = 'u32[]', space=smem, size = 0x4, offset = 0x4, fixed_abs, tag = 'smem constant byte address 0x4 - core index']
  #allocation1 [shape = 'u32[144,128]{1,0:T(1,128)}', space=vmem, size = 0x12000, scoped, tag = 'internal scratch']
  #allocation2 [shape = 'f32[18,72]{1,0:T(8,128)}', space=vmem, size = 0x3000, scoped, tag = 'scratch operand']
  %s0 = inlined_call_operand.hbm [shape: f32[2,16,64], index: 0, kind: input, shape index: {}]
  %s1 = inlined_call_operand.vmem [shape: f32[2,64], index: 1, kind: input, shape index: {}]
  %s2 = inlined_call_operand.hbm [shape: f32[576,128], index: 2, kind: input, shape index: {}]
  %s3 = inlined_call_operand.hbm [shape: f32[2,16,128], index: 3, kind: output, shape index: {}]
  %s4 = sld [smem:[#allocation0]]
  $region53: #{tpu_custom_call.1} parent=0
    _
  %s6 = ssub.s32 1, %s4
  %s7 = scalar_select 0, %s6, %s4
  $region1: #{tpu_custom_call.1} parent=0
    #allocation3 [shape = 'u8[16384]{0}', space=vmem, size = 0x4000, scoped, tag = 'input window, operand 0']
    #allocation4 [shape = 's32[2]{0}', space=sflag, size = 0x8, scoped, tag = 'scoped memory for tpu_custom_call.1']
    #allocation5 [shape = 's32[2]{0}', space=sflag, size = 0x8, scoped, tag = 'scoped memory for tpu_custom_call.1']
    #allocation6 [shape = 'u8[294912]{0}', space=vmem, size = 0x48000, scoped, tag = 'input window, operand 2, single buffered']
    #allocation7 [shape = 's32[1]{0}', space=sflag, size = 0x4, scoped, tag = 'scoped memory for tpu_custom_call.1']
    #allocation8 [shape = 'u8[16384]{0}', space=vmem, size = 0x4000, scoped, tag = 'output window, operand 0']
    %8 = vsyncpa [#allocation4], 0
    %s9 = scalar_lea.sflag [#allocation4], 1
    %10 = vsyncpa %s9, 0
    %11 = vsyncpa [#allocation7], 0
    %12 = vsyncpa [#allocation5], 0
    %s13 = scalar_lea.sflag [#allocation5], 1
    %14 = vsyncpa %s13, 0
    loop: start=0, step=1, limit=4
    $region2: #{tpu_custom_call.1} parent=1 // loop_pre_header
      _
    $region3: #{tpu_custom_call.1} parent=1 // loop_header
      %s16 = sphi 0, %s20
      %p17 = scmp.ge.s32.totalorder %s16, 4
      %s26 = sphi 0, %s28
      %s29 = sphi 0, %s26
      %s30 = sphi 0, %s29
      %s46 = sphi 0, %s30
      %s50 = sphi 0, %s50
      %s52 = sphi 0, %s50
      %s53 = sphi 0, %s52
      %s67 = sphi 0, %s53
      %s71 = sphi 0, %s71
      %s73 = sphi 0, %s71
      %s74 = sphi 0, %s73
      %s88 = sphi 0, %s74
      %s94 = sphi 0, %s96
      %s97 = sphi 0, %s94
      %s98 = sphi 0, %s97
      %s114 = sphi 0, %s98
    $region4: #{tpu_custom_call.1} parent=1 // loop_header_branch
      %19 = sbr.rel (%p17) target = $region8
    $region5: #{tpu_custom_call.1} parent=1 // loop_body
      %s21 = ssub.s32 %s16, 1
      %s22 = ssub.s32 %s16, 2
      %s23 = sadd.s32 %s16, 1
      %s24 = ssub.s32 %s16, %s23
      %p25 = scmp.eq.s32.totalorder %s24, 0
      %s27 = sadd.s32 %s26, 1
      %s28 = scalar_select %p25, %s26, %s27
      %p31 = pneg %p25
      %p32 = scmp.eq.s32.totalorder %s16, 1
      %p33 = por %p31, %p32
      %p34 = scmp.ne.s32.totalorder %s26, %s29
      %p35 = scmp.eq.s32.totalorder %s16, 0
      %p36 = por %p34, %p35
      %p37 = scmp.ne.s32.totalorder %s26, %s29
      %p38 = scmp.eq.s32.totalorder %s21, 1
      %p39 = por %p37, %p38
      %p40 = scmp.ne.s32.totalorder %s29, %s30
      %p41 = scmp.eq.s32.totalorder %s21, 0
      %p42 = por %p40, %p41
      %p43 = scmp.ne.s32.totalorder %s29, %s30
      %p44 = scmp.eq.s32.totalorder %s22, 1
      %p45 = por %p43, %p44
      %p47 = scmp.ne.s32.totalorder %s30, %s46
      %p48 = scmp.eq.s32.totalorder %s22, 0
      %p49 = por %p47, %p48
      %s51 = sadd.s32 %s50, 1
      %p54 = scmp.eq.s32.totalorder %s16, 1
      %p55 = scmp.ne.s32.totalorder %s50, %s52
      %p56 = scmp.eq.s32.totalorder %s16, 0
      %p57 = por %p55, %p56
      %p58 = scmp.ne.s32.totalorder %s50, %s52
      %p59 = scmp.eq.s32.totalorder %s21, 1
      %p60 = por %p58, %p59
      %p61 = scmp.ne.s32.totalorder %s52, %s53
      %p62 = scmp.eq.s32.totalorder %s21, 0
      %p63 = por %p61, %p62
      %p64 = scmp.ne.s32.totalorder %s52, %s53
      %p65 = scmp.eq.s32.totalorder %s22, 1
      %p66 = por %p64, %p65
      %p68 = scmp.ne.s32.totalorder %s53, %s67
      %p69 = scmp.eq.s32.totalorder %s22, 0
      %p70 = por %p68, %p69
      %s72 = sadd.s32 %s71, 1
      %p75 = scmp.eq.s32.totalorder %s16, 1
      %p76 = scmp.ne.s32.totalorder %s71, %s73
      %p77 = scmp.eq.s32.totalorder %s16, 0
      %p78 = por %p76, %p77
      %p79 = scmp.ne.s32.totalorder %s71, %s73
      %p80 = scmp.eq.s32.totalorder %s21, 1
      %p81 = por %p79, %p80
      %p82 = scmp.ne.s32.totalorder %s73, %s74
      %p83 = scmp.eq.s32.totalorder %s21, 0
      %p84 = por %p82, %p83
      %p85 = scmp.ne.s32.totalorder %s73, %s74
      %p86 = scmp.eq.s32.totalorder %s22, 1
      %p87 = por %p85, %p86
      %p89 = scmp.ne.s32.totalorder %s74, %s88
      %p90 = scmp.eq.s32.totalorder %s22, 0
      %p91 = por %p89, %p90
      %s92 = ssub.s32 %s16, %s23
      %p93 = scmp.eq.s32.totalorder %s92, 0
      %s95 = sadd.s32 %s94, 1
      %s96 = scalar_select %p93, %s94, %s95
      %p99 = pneg %p93
      %p100 = scmp.eq.s32.totalorder %s16, 1
      %p101 = por %p99, %p100
      %p102 = scmp.ne.s32.totalorder %s94, %s97
      %p103 = scmp.eq.s32.totalorder %s16, 0
      %p104 = por %p102, %p103
      %p105 = scmp.ne.s32.totalorder %s94, %s97
      %p106 = scmp.eq.s32.totalorder %s21, 1
      %p107 = por %p105, %p106
      %p108 = scmp.ne.s32.totalorder %s97, %s98
      %p109 = scmp.eq.s32.totalorder %s21, 0
      %p110 = por %p108, %p109
      %p111 = scmp.ne.s32.totalorder %s97, %s98
      %p112 = scmp.eq.s32.totalorder %s22, 1
      %p113 = por %p111, %p112
      %p115 = scmp.ne.s32.totalorder %s98, %s114
      %p116 = scmp.eq.s32.totalorder %s22, 0
      %p117 = por %p115, %p116
      %p118 = scmp.le.s32.totalorder 1, %s16
      %p119 = scmp.lt.s32.totalorder %s16, 3
      %p120 = pnand %p118, %p119
      %p121 = pneg %p120
      // Predicated region
      $region9: #{tpu_custom_call.1} parent=5 // pred_check
        _
      $region10: #{tpu_custom_call.1} parent=5 // pred_check_branch
        %123 = sbr.rel (%p120) target = $region12
      $region11: #{tpu_custom_call.1} parent=5 // pred_region
        %s124 = ssub.s32 %s16, 1
        // Predicated region
        $region13: #{tpu_custom_call.1} parent=11 // pred_check
          %p125 = pneg %p63
        $region14: #{tpu_custom_call.1} parent=11 // pred_check_branch
          %127 = sbr.rel (%p125) target = $region16
        $region15: #{tpu_custom_call.1} parent=11 // pred_region
          _
        $region16: #{tpu_custom_call.1} parent=11 // pred_fallthru
          _
        // Predicated region
        $region17: #{tpu_custom_call.1} parent=11 // pred_check
          %p128 = pneg %p84
        $region18: #{tpu_custom_call.1} parent=11 // pred_check_branch
          %130 = sbr.rel (%p128) target = $region20
        $region19: #{tpu_custom_call.1} parent=11 // pred_region
          %s132 = ssub.s32 9216, 9216
          %133 = vsyncadd [#allocation7], %s132
          %s134 = sshll.u32 [#allocation6], 4
          %s135 = int_to_ptr.vmem [resolvable:$true] %s134
          %140 = dma.hbm_to_vmem [thread:$0]  %s2, 9216, %s135, [#allocation7], 128, 128, 8
        $region20: #{tpu_custom_call.1} parent=11 // pred_fallthru
          _
      $region12: #{tpu_custom_call.1} parent=5 // pred_fallthru
        _
      %p141 = scmp.lt.s32.totalorder %s16, 2
      // Predicated region
      $region21: #{tpu_custom_call.1} parent=5 // pred_check
        %p142 = pneg %p141
      $region22: #{tpu_custom_call.1} parent=5 // pred_check_branch
        %144 = sbr.rel (%p142) target = $region24
      $region23: #{tpu_custom_call.1} parent=5 // pred_region
        // Predicated region
        $region25: #{tpu_custom_call.1} parent=23 // pred_check
          %p145 = pneg %p36
        $region26: #{tpu_custom_call.1} parent=23 // pred_check_branch
          %147 = sbr.rel (%p145) target = $region28
        $region27: #{tpu_custom_call.1} parent=23 // pred_region
          %s148 = sand.u32 %s26, 1
          %s149 = scalar_lea.sflag [#allocation4], %s148
          %s150 = sand.u32 %s26, 1
          %s151 = smul.addr %s150, 16
          %s152 = scalar_lea.vmem [#allocation3], %s151
          %s154 = ssub.s32 256, 256
          %155 = vsyncadd %s149, %s154
          %s156 = smul.addr %s16, 2
          %s157 = smul.addr %s156, 128
          %s158 = scalar_lea.hbm %s0, %s157
          %s159 = sshll.u32 %s152, 4
          %s160 = int_to_ptr.vmem [resolvable:$true] %s159
          %165 = dma.hbm_to_vmem [thread:$0]  %s158, 256, %s160, %s149, 128, 128, 8
        $region28: #{tpu_custom_call.1} parent=23 // pred_fallthru
          _
      $region24: #{tpu_custom_call.1} parent=5 // pred_fallthru
        _
      %p166 = scmp.le.s32.totalorder 1, %s16
      %p167 = scmp.lt.s32.totalorder %s16, 3
      %p168 = pnand %p166, %p167
      %p169 = pneg %p168
      // Predicated region
      $region29: #{tpu_custom_call.1} parent=5 // pred_check
        _
      $region30: #{tpu_custom_call.1} parent=5 // pred_check_branch
        %171 = sbr.rel (%p168) target = $region32
      $region31: #{tpu_custom_call.1} parent=5 // pred_region
        %s172 = ssub.s32 %s16, 1
        %s173 = sand.u32 %s29, 1
        %s174 = scalar_lea.sflag [#allocation4], %s173
        %s175 = sand.u32 %s29, 1
        %s176 = smul.addr %s175, 16
        %s177 = scalar_lea.vmem [#allocation3], %s176
        // Predicated region
        $region33: #{tpu_custom_call.1} parent=31 // pred_check
          %p178 = pneg %p42
        $region34: #{tpu_custom_call.1} parent=31 // pred_check_branch
          %180 = sbr.rel (%p178) target = $region36
        $region35: #{tpu_custom_call.1} parent=31 // pred_region
          %181 = dma.done %s174, 256
        $region36: #{tpu_custom_call.1} parent=31 // pred_fallthru
          _
        // Predicated region
        $region37: #{tpu_custom_call.1} parent=31 // pred_check
          %p182 = pneg %p84
        $region38: #{tpu_custom_call.1} parent=31 // pred_check_branch
          %184 = sbr.rel (%p182) target = $region40
        $region39: #{tpu_custom_call.1} parent=31 // pred_region
          %185 = dma.done [#allocation7], 9216
        $region40: #{tpu_custom_call.1} parent=31 // pred_fallthru
          _
        %s186 = sand.u32 %s29, 1
        %s187 = scalar_lea.sflag [#allocation4], %s186
        %s188 = sand.u32 %s29, 1
        %s189 = smul.addr %s188, 16
        %s190 = scalar_lea.vmem [#allocation3], %s189
        %p191 = pneg %p42
        %p192 = pneg %p39
        %p193 = pneg %p63
        %p194 = pneg %p60
        %p195 = pneg %p84
        %p196 = pneg %p81
        %p197 = pneg %p110
        %p198 = pneg %p107
        %s199 = sand.u32 %s97, 1
        %s200 = scalar_lea.sflag [#allocation5], %s199
        %s201 = sand.u32 %s97, 1
        %s202 = smul.addr %s201, 16
        %s203 = scalar_lea.vmem [#allocation8], %s202
        %vm204 = vcmask 588800
        %205 = vst.msk [vmem:[#allocation2] sm:$0xff] %vm204, 0.0
        %206 = vst.msk [vmem:[#allocation2 + $0x8] sm:$0xff] %vm204, 0.0
        %vm207 = vcmask 582656
        %208 = vst.msk [vmem:[#allocation2 + $0x10] sm:$0x3] %vm207, 0.0
        %v209 = vld [vmem:[%s1] sm:$0x1]
        %v210 = vld [vmem:[%s1 + $0x1] sm:$0x1]
        %v211 = vld [vmem:[%s177] sm:$0xff]
        %v212 = vld [vmem:[%s177 + $0x8] sm:$0xff]
        %v213 = vlaneseq
        %v214 = vshrl.u32 %v213, 7
        %v215 = vsub.s32 0, %v214
        %v216 = vrot.slane %v209, %v215
        %v217 = vmul.f32 %v211, %v216
        %v218 = vmul.f32 %v212, %v216
        %v219 = vlaneseq
        %v220 = vshrl.u32 %v219, 7
        %v221 = vsub.s32 0, %v220
        %v222 = vrot.slane %v210, %v221
        %v223 = vadd.f32 %v217, %v222
        %v224 = vadd.f32 %v218, %v222
        %v225 = vmax.f32 %v223, 0.0
        %v226 = vmax.f32 %v224, 0.0
        %229 = vrot.lane.b32.xlu0 %v225, 4
        %v230 = vpop.permute.xlu0 %229
        %231 = vrot.lane.b32.xlu0 %v226, 4
        %v232 = vpop.permute.xlu0 %231
        %vm235 = vcmask 556064
        %236 = vst.msk [vmem:[#allocation2 + $0x1] sm:$0xff] %vm235, %v230
        %237 = vst.msk [vmem:[#allocation2 + $0x9] sm:$0xff] %vm235, %v232
        %v238 = vld [vmem:[#allocation2] sm:$0xff]
        %v239 = vld [vmem:[#allocation2 + $0x8] sm:$0xff]
        %v240 = vld [vmem:[#allocation2 + $0x1] sm:$0xff]
        %v241 = vld [vmem:[#allocation2 + $0x9] sm:$0xff]
        %v242 = vld [vmem:[#allocation2 + $0x2] sm:$0xff]
        %v243 = vld [vmem:[#allocation2 + $0xa] sm:$0xff]
        %246 = vrot.lane.b32.xlu0 %v238, 60
        %v247 = vpop.permute.xlu0 %246
        %248 = vrot.lane.b32.xlu0 %v239, 60
        %v249 = vpop.permute.xlu0 %248
        %252 = vrot.lane.b32.xlu0 %v238, 120
        %v253 = vpop.permute.xlu0 %252
        %254 = vrot.lane.b32.xlu0 %v239, 120
        %v255 = vpop.permute.xlu0 %254
        %260 = vrot.lane.b32.xlu0 %v240, 64
        %v261 = vpop.permute.xlu0 %260
        %262 = vrot.lane.b32.xlu0 %v241, 64
        %v263 = vpop.permute.xlu0 %262
        %266 = vrot.lane.b32.xlu0 %v240, 124
        %v267 = vpop.permute.xlu0 %266
        %268 = vrot.lane.b32.xlu0 %v241, 124
        %v269 = vpop.permute.xlu0 %268
        %272 = vrot.lane.b32.xlu0 %v240, 56
        %v273 = vpop.permute.xlu0 %272
        %274 = vrot.lane.b32.xlu0 %v241, 56
        %v275 = vpop.permute.xlu0 %274
        %280 = vrot.lane.b32.xlu0 %v242, 60
        %v281 = vpop.permute.xlu0 %280
        %282 = vrot.lane.b32.xlu0 %v243, 60
        %v283 = vpop.permute.xlu0 %282
        %286 = vrot.lane.b32.xlu0 %v242, 120
        %v287 = vpop.permute.xlu0 %286
        %288 = vrot.lane.b32.xlu0 %v243, 120
        %v289 = vpop.permute.xlu0 %288
        %vm290 = vcmask 523264
        %v291 = vsel %vm290, %v238, %v247
        %v292 = vsel %vm290, %v239, %v249
        %v293 = vsel %vm290, %v253, %v261
        %v294 = vsel %vm290, %v255, %v263
        %v295 = vsel %vm290, %v267, %v273
        %v296 = vsel %vm290, %v269, %v275
        %v297 = vsel %vm290, %v242, %v281
        %v298 = vsel %vm290, %v243, %v283
        %v299 = vld [vmem:[#allocation6] sm:$0xff]
        %v300 = vld [vmem:[#allocation6 + $0x8] sm:$0xff]
        %v301 = vld [vmem:[#allocation6 + $0x10] sm:$0xff]
        %v302 = vld [vmem:[#allocation6 + $0x18] sm:$0xff]
        %v303 = vld [vmem:[#allocation6 + $0x20] sm:$0xff]
        %v304 = vld [vmem:[#allocation6 + $0x28] sm:$0xff]
        %v305 = vld [vmem:[#allocation6 + $0x30] sm:$0xff]
        %v306 = vld [vmem:[#allocation6 + $0x38] sm:$0xff]
        %v307 = vld [vmem:[#allocation6 + $0x40] sm:$0xff]
        %v308 = vld [vmem:[#allocation6 + $0x48] sm:$0xff]
        %v309 = vld [vmem:[#allocation6 + $0x50] sm:$0xff]
        %v310 = vld [vmem:[#allocation6 + $0x58] sm:$0xff]
        %v311 = vld [vmem:[#allocation6 + $0x60] sm:$0xff]
        %v312 = vld [vmem:[#allocation6 + $0x68] sm:$0xff]
        %v313 = vld [vmem:[#allocation6 + $0x70] sm:$0xff]
        %v314 = vld [vmem:[#allocation6 + $0x78] sm:$0xff]
        %v315 = vld [vmem:[#allocation6 + $0x80] sm:$0xff]
        %v316 = vld [vmem:[#allocation6 + $0x88] sm:$0xff]
        %v317 = vld [vmem:[#allocation6 + $0x90] sm:$0xff]
        %v318 = vld [vmem:[#allocation6 + $0x98] sm:$0xff]
        %v319 = vld [vmem:[#allocation6 + $0xa0] sm:$0xff]
        %v320 = vld [vmem:[#allocation6 + $0xa8] sm:$0xff]
        %v321 = vld [vmem:[#allocation6 + $0xb0] sm:$0xff]
        %v322 = vld [vmem:[#allocation6 + $0xb8] sm:$0xff]
        %v323 = vld [vmem:[#allocation6 + $0xc0] sm:$0xff]
        %v324 = vld [vmem:[#allocation6 + $0xc8] sm:$0xff]
        %v325 = vld [vmem:[#allocation6 + $0xd0] sm:$0xff]
        %v326 = vld [vmem:[#allocation6 + $0xd8] sm:$0xff]
        %v327 = vld [vmem:[#allocation6 + $0xe0] sm:$0xff]
        %v328 = vld [vmem:[#allocation6 + $0xe8] sm:$0xff]
        %v329 = vld [vmem:[#allocation6 + $0xf0] sm:$0xff]
        %v330 = vld [vmem:[#allocation6 + $0xf8] sm:$0xff]
        %v331 = vld [vmem:[#allocation6 + $0x100] sm:$0xff]
        %v332 = vld [vmem:[#allocation6 + $0x108] sm:$0xff]
        %v333 = vld [vmem:[#allocation6 + $0x110] sm:$0xff]
        %v334 = vld [vmem:[#allocation6 + $0x118] sm:$0xff]
        %v335 = vld [vmem:[#allocation6 + $0x120] sm:$0xff]
        %v336 = vld [vmem:[#allocation6 + $0x128] sm:$0xff]
        %v337 = vld [vmem:[#allocation6 + $0x130] sm:$0xff]
        %v338 = vld [vmem:[#allocation6 + $0x138] sm:$0xff]
        %v339 = vld [vmem:[#allocation6 + $0x140] sm:$0xff]
        %v340 = vld [vmem:[#allocation6 + $0x148] sm:$0xff]
        %v341 = vld [vmem:[#allocation6 + $0x150] sm:$0xff]
        %v342 = vld [vmem:[#allocation6 + $0x158] sm:$0xff]
        %v343 = vld [vmem:[#allocation6 + $0x160] sm:$0xff]
        %v344 = vld [vmem:[#allocation6 + $0x168] sm:$0xff]
        %v345 = vld [vmem:[#allocation6 + $0x170] sm:$0xff]
        %v346 = vld [vmem:[#allocation6 + $0x178] sm:$0xff]
        %v347 = vld [vmem:[#allocation6 + $0x180] sm:$0xff]
        %v348 = vld [vmem:[#allocation6 + $0x188] sm:$0xff]
        %v349 = vld [vmem:[#allocation6 + $0x190] sm:$0xff]
        %v350 = vld [vmem:[#allocation6 + $0x198] sm:$0xff]
        %v351 = vld [vmem:[#allocation6 + $0x1a0] sm:$0xff]
        %v352 = vld [vmem:[#allocation6 + $0x1a8] sm:$0xff]
        %v353 = vld [vmem:[#allocation6 + $0x1b0] sm:$0xff]
        %v354 = vld [vmem:[#allocation6 + $0x1b8] sm:$0xff]
        %v355 = vld [vmem:[#allocation6 + $0x1c0] sm:$0xff]
        %v356 = vld [vmem:[#allocation6 + $0x1c8] sm:$0xff]
        %v357 = vld [vmem:[#allocation6 + $0x1d0] sm:$0xff]
        %v358 = vld [vmem:[#allocation6 + $0x1d8] sm:$0xff]
        %v359 = vld [vmem:[#allocation6 + $0x1e0] sm:$0xff]
        %v360 = vld [vmem:[#allocation6 + $0x1e8] sm:$0xff]
        %v361 = vld [vmem:[#allocation6 + $0x1f0] sm:$0xff]
        %v362 = vld [vmem:[#allocation6 + $0x1f8] sm:$0xff]
        %v363 = vld [vmem:[#allocation6 + $0x200] sm:$0xff]
        %v364 = vld [vmem:[#allocation6 + $0x208] sm:$0xff]
        %v365 = vld [vmem:[#allocation6 + $0x210] sm:$0xff]
        %v366 = vld [vmem:[#allocation6 + $0x218] sm:$0xff]
        %v367 = vld [vmem:[#allocation6 + $0x220] sm:$0xff]
        %v368 = vld [vmem:[#allocation6 + $0x228] sm:$0xff]
        %v369 = vld [vmem:[#allocation6 + $0x230] sm:$0xff]
        %v370 = vld [vmem:[#allocation6 + $0x238] sm:$0xff]
        %v371 = vsel %vm290, %v287, 0
        %v373 = vsel %vm290, %v289, 0
        %375 = vmatprep.subr.mxu0 0.0
        %376 = vmatpush1.msra.mxu0 %v299
        %377 = vmatprep.subr.mxu0 0.0
        %378 = vmatpush1.msra.mxu0 %v300
        %379 = vmatprep.subr.mxu0 0.0
        %380 = vmatpush1.msra.mxu0 %v301
        %381 = vmatprep.subr.mxu0 0.0
        %382 = vmatpush1.msra.mxu0 %v302
        %383 = vmatprep.subr.mxu0 0.0
        %384 = vmatpush1.msra.mxu0 %v303
        %385 = vmatprep.subr.mxu0 0.0
        %386 = vmatpush1.msra.mxu0 %v304
        %387 = vmatprep.subr.mxu0 0.0
        %388 = vmatpush1.msra.mxu0 %v305
        %389 = vmatprep.subr.mxu0 0.0
        %390 = vmatpush1.msra.mxu0 %v306
        %391 = vmatprep.subr.mxu0 0.0
        %392 = vmatpush1.msra.mxu0 %v307
        %393 = vmatprep.subr.mxu0 0.0
        %394 = vmatpush1.msra.mxu0 %v308
        %395 = vmatprep.subr.mxu0 0.0
        %396 = vmatpush1.msra.mxu0 %v309
        %397 = vmatprep.subr.mxu0 0.0
        %398 = vmatpush1.msra.mxu0 %v310
        %399 = vmatprep.subr.mxu0 0.0
        %400 = vmatpush1.msra.mxu0 %v311
        %401 = vmatprep.subr.mxu0 0.0
        %402 = vmatpush1.msra.mxu0 %v312
        %403 = vmatprep.subr.mxu0 0.0
        %404 = vmatpush1.msra.mxu0 %v313
        %405 = vmatprep.subr.mxu0 0.0
        %406 = vmatpush1.msra.mxu0 %v314
        %407 = vmatprep.subr.mxu0 0.0
        %408 = vmatpush1.msra.mxu0 %v315
        %409 = vmatprep.subr.mxu0 0.0
        %410 = vmatpush1.msra.mxu0 %v316
        %411 = vmatprep.subr.mxu0 0.0
        %412 = vmatpush1.msra.mxu0 %v317
        %413 = vmatprep.subr.mxu0 0.0
        %414 = vmatpush1.msra.mxu0 %v318
        %415 = vmatprep.subr.mxu0 0.0
        %416 = vmatpush1.msra.mxu0 %v319
        %417 = vmatprep.subr.mxu0 0.0
        %418 = vmatpush1.msra.mxu0 %v320
        %419 = vmatprep.subr.mxu0 0.0
        %420 = vmatpush1.msra.mxu0 %v321
        %421 = vmatprep.subr.mxu0 0.0
        %422 = vmatpush1.msra.mxu0 %v322
        %423 = vmatprep.subr.mxu0 0.0
        %424 = vmatpush1.msra.mxu0 %v323
        %425 = vmatprep.subr.mxu0 0.0
        %426 = vmatpush1.msra.mxu0 %v324
        %427 = vmatprep.subr.mxu0 0.0
        %428 = vmatpush1.msra.mxu0 %v325
        %429 = vmatprep.subr.mxu0 0.0
        %430 = vmatpush1.msra.mxu0 %v326
        %431 = vmatprep.subr.mxu0 0.0
        %432 = vmatpush1.msra.mxu0 %v327
        %433 = vmatprep.subr.mxu0 0.0
        %434 = vmatpush1.msra.mxu0 %v328
        %435 = vmatprep.subr.mxu0 0.0
        %436 = vmatpush1.msra.mxu0 %v329
        %437 = vmatprep.subr.mxu0 0.0
        %438 = vmatpush1.msra.mxu0 %v330
        %439 = vmatprep.mubr.f32.mxu0 %v293
        %440 = vmatmul.mubr.f32.gmra.mrb[0].mxu0 %v291
        %v441 = vpop.f32.mrb[0].mxu0
        %v442 = vadd.f32 0.0, %v441
        %v443 = vpop.f32.mrb[0].mxu0
        %444 = vmatprep.mubr.f32.mxu0 %v294
        %445 = vmatmul.mubr.f32.gmra.mrb[0].mxu0 %v292
        %v446 = vpop.f32.mrb[0].mxu0
        %v447 = vadd.f32 0.0, %v446
        %v448 = vpop.f32.mrb[0].mxu0
        %449 = vdwg.mxu0
        %450 = vmatprep.subr.mxu0 0.0
        %451 = vmatpush1.msra.mxu0 %v331
        %452 = vmatprep.subr.mxu0 0.0
        %453 = vmatpush1.msra.mxu0 %v332
        %454 = vmatprep.subr.mxu0 0.0
        %455 = vmatpush1.msra.mxu0 %v333
        %456 = vmatprep.subr.mxu0 0.0
        %457 = vmatpush1.msra.mxu0 %v334
        %458 = vmatprep.subr.mxu0 0.0
        %459 = vmatpush1.msra.mxu0 %v335
        %460 = vmatprep.subr.mxu0 0.0
        %461 = vmatpush1.msra.mxu0 %v336
        %462 = vmatprep.subr.mxu0 0.0
        %463 = vmatpush1.msra.mxu0 %v337
        %464 = vmatprep.subr.mxu0 0.0
        %465 = vmatpush1.msra.mxu0 %v338
        %466 = vmatprep.subr.mxu0 0.0
        %467 = vmatpush1.msra.mxu0 %v339
        %468 = vmatprep.subr.mxu0 0.0
        %469 = vmatpush1.msra.mxu0 %v340
        %470 = vmatprep.subr.mxu0 0.0
        %471 = vmatpush1.msra.mxu0 %v341
        %472 = vmatprep.subr.mxu0 0.0
        %473 = vmatpush1.msra.mxu0 %v342
        %474 = vmatprep.subr.mxu0 0.0
        %475 = vmatpush1.msra.mxu0 %v343
        %476 = vmatprep.subr.mxu0 0.0
        %477 = vmatpush1.msra.mxu0 %v344
        %478 = vmatprep.subr.mxu0 0.0
        %479 = vmatpush1.msra.mxu0 %v345
        %480 = vmatprep.subr.mxu0 0.0
        %481 = vmatpush1.msra.mxu0 %v346
        %482 = vmatprep.subr.mxu0 0.0
        %483 = vmatpush1.msra.mxu0 %v347
        %484 = vmatprep.subr.mxu0 0.0
        %485 = vmatpush1.msra.mxu0 %v348
        %486 = vmatprep.subr.mxu0 0.0
        %487 = vmatpush1.msra.mxu0 %v349
        %488 = vmatprep.subr.mxu0 0.0
        %489 = vmatpush1.msra.mxu0 %v350
        %490 = vmatprep.subr.mxu0 0.0
        %491 = vmatpush1.msra.mxu0 %v351
        %492 = vmatprep.subr.mxu0 0.0
        %493 = vmatpush1.msra.mxu0 %v352
        %494 = vmatprep.subr.mxu0 0.0
        %495 = vmatpush1.msra.mxu0 %v353
        %496 = vmatprep.subr.mxu0 0.0
        %497 = vmatpush1.msra.mxu0 %v354
        %498 = vmatprep.subr.mxu0 0.0
        %499 = vmatpush1.msra.mxu0 %v355
        %500 = vmatprep.subr.mxu0 0.0
        %501 = vmatpush1.msra.mxu0 %v356
        %502 = vmatprep.subr.mxu0 0.0
        %503 = vmatpush1.msra.mxu0 %v357
        %504 = vmatprep.subr.mxu0 0.0
        %505 = vmatpush1.msra.mxu0 %v358
        %506 = vmatprep.subr.mxu0 0.0
        %507 = vmatpush1.msra.mxu0 %v359
        %508 = vmatprep.subr.mxu0 0.0
        %509 = vmatpush1.msra.mxu0 %v360
        %510 = vmatprep.subr.mxu0 0.0
        %511 = vmatpush1.msra.mxu0 %v361
        %512 = vmatprep.subr.mxu0 0.0
        %513 = vmatpush1.msra.mxu0 %v362
        %514 = vmatprep.mubr.f32.mxu0 %v297
        %515 = vmatmul.mubr.f32.gmra.mrb[0].mxu0 %v295
        %v516 = vpop.f32.mrb[0].mxu0
        %v517 = vadd.f32 %v442, %v516
        %v518 = vpop.f32.mrb[0].mxu0
        %519 = vmatprep.mubr.f32.mxu0 %v298
        %520 = vmatmul.mubr.f32.gmra.mrb[0].mxu0 %v296
        %v521 = vpop.f32.mrb[0].mxu0
        %v522 = vadd.f32 %v447, %v521
        %v523 = vpop.f32.mrb[0].mxu0
        %524 = vdwg.mxu0
        %525 = vmatprep.subr.mxu0 0.0
        %526 = vmatpush1.msra.mxu0 %v363
        %527 = vmatprep.subr.mxu0 0.0
        %528 = vmatpush1.msra.mxu0 %v364
        %529 = vmatprep.subr.mxu0 0.0
        %530 = vmatpush1.msra.mxu0 %v365
        %531 = vmatprep.subr.mxu0 0.0
        %532 = vmatpush1.msra.mxu0 %v366
        %533 = vmatprep.subr.mxu0 0.0
        %534 = vmatpush1.msra.mxu0 %v367
        %535 = vmatprep.subr.mxu0 0.0
        %536 = vmatpush1.msra.mxu0 %v368
        %537 = vmatprep.subr.mxu0 0.0
        %538 = vmatpush1.msra.mxu0 %v369
        %539 = vmatprep.subr.mxu0 0.0
        %540 = vmatpush1.msra.mxu0 %v370
        %541 = vmatprep.subr.mxu0 0.0
        %542 = vmatpush1.msra.mxu0 0.0
        %543 = vmatprep.subr.mxu0 0.0
        %544 = vmatpush1.msra.mxu0 0.0
        %545 = vmatprep.subr.mxu0 0.0
        %546 = vmatpush1.msra.mxu0 0.0
        %547 = vmatprep.subr.mxu0 0.0
        %548 = vmatpush1.msra.mxu0 0.0
        %549 = vmatprep.subr.mxu0 0.0
        %550 = vmatpush1.msra.mxu0 0.0
        %551 = vmatprep.subr.mxu0 0.0
        %552 = vmatpush1.msra.mxu0 0.0
        %553 = vmatprep.subr.mxu0 0.0
        %554 = vmatpush1.msra.mxu0 0.0
        %555 = vmatprep.subr.mxu0 0.0
        %556 = vmatpush1.msra.mxu0 0.0
        %557 = vmatprep.subr.mxu0 0.0
        %558 = vmatpush1.msra.mxu0 0.0
        %559 = vmatprep.subr.mxu0 0.0
        %560 = vmatpush1.msra.mxu0 0.0
        %561 = vmatprep.subr.mxu0 0.0
        %562 = vmatpush1.msra.mxu0 0.0
        %563 = vmatprep.subr.mxu0 0.0
        %564 = vmatpush1.msra.mxu0 0.0
        %565 = vmatprep.subr.mxu0 0.0
        %566 = vmatpush1.msra.mxu0 0.0
        %567 = vmatprep.subr.mxu0 0.0
        %568 = vmatpush1.msra.mxu0 0.0
        %569 = vmatprep.subr.mxu0 0.0
        %570 = vmatpush1.msra.mxu0 0.0
        %571 = vmatprep.subr.mxu0 0.0
        %572 = vmatpush1.msra.mxu0 0.0
        %573 = vmatprep.subr.mxu0 0.0
        %574 = vmatpush1.msra.mxu0 0.0
        %575 = vmatprep.subr.mxu0 0.0
        %576 = vmatpush1.msra.mxu0 0.0
        %577 = vmatprep.subr.mxu0 0.0
        %578 = vmatpush1.msra.mxu0 0.0
        %579 = vmatprep.subr.mxu0 0.0
        %580 = vmatpush1.msra.mxu0 0.0
        %581 = vmatprep.subr.mxu0 0.0
        %582 = vmatpush1.msra.mxu0 0.0
        %583 = vmatprep.subr.mxu0 0.0
        %584 = vmatpush1.msra.mxu0 0.0
        %585 = vmatprep.subr.mxu0 0.0
        %586 = vmatpush1.msra.mxu0 0.0
        %587 = vmatprep.subr.mxu0 0.0
        %588 = vmatpush1.msra.mxu0 0.0
        %589 = vmatprep.mubr.f32.mxu0 0.0
        %590 = vmatmul.mubr.f32.gmra.mrb[0].mxu0 %v371
        %v591 = vpop.f32.mrb[0].mxu0
        %v592 = vadd.f32 %v517, %v591
        %v593 = vpop.f32.mrb[0].mxu0
        %594 = vmatprep.mubr.f32.mxu0 0.0
        %595 = vmatmul.mubr.f32.gmra.mrb[0].mxu0 %v373
        %v596 = vpop.f32.mrb[0].mxu0
        %v597 = vadd.f32 %v522, %v596
        %v598 = vpop.f32.mrb[0].mxu0
        %599 = vdwg.mxu0
        %600 = vst [vmem:[%s203] sm:$0xff] %v592
        %601 = vst [vmem:[%s203 + $0x8] sm:$0xff] %v597
        %s602 = sand.u32 %s97, 1
        %s603 = scalar_lea.sflag [#allocation5], %s602
        %s604 = sand.u32 %s97, 1
        %s605 = smul.addr %s604, 16
        %s606 = scalar_lea.vmem [#allocation8], %s605
        // Predicated region
        $region41: #{tpu_custom_call.1} parent=31 // pred_check
          %p607 = pneg %p107
        $region42: #{tpu_custom_call.1} parent=31 // pred_check_branch
          %609 = sbr.rel (%p607) target = $region44
        $region43: #{tpu_custom_call.1} parent=31 // pred_region
          %s611 = ssub.s32 256, 256
          %612 = vsyncadd %s603, %s611
          %s613 = smul.addr %s21, 2
          %s614 = smul.addr %s613, 128
          %s615 = scalar_lea.hbm %s3, %s614
          %s616 = sshll.u32 %s606, 4
          %s617 = int_to_ptr.vmem [resolvable:$true] %s616
          %622 = dma.vmem_to_hbm [thread:$0]  %s617, 256, %s615, %s603, 128, 128, 8
        $region44: #{tpu_custom_call.1} parent=31 // pred_fallthru
          _
      $region32: #{tpu_custom_call.1} parent=5 // pred_fallthru
        _
      %p623 = scmp.le.s32.totalorder 2, %s16
      // Predicated region
      $region45: #{tpu_custom_call.1} parent=5 // pred_check
        %p624 = pneg %p623
      $region46: #{tpu_custom_call.1} parent=5 // pred_check_branch
        %626 = sbr.rel (%p624) target = $region48
      $region47: #{tpu_custom_call.1} parent=5 // pred_region
        %s627 = ssub.s32 %s16, 2
        // Predicated region
        $region49: #{tpu_custom_call.1} parent=47 // pred_check
          %p628 = pneg %p113
        $region50: #{tpu_custom_call.1} parent=47 // pred_check_branch
          %630 = sbr.rel (%p628) target = $region52
        $region51: #{tpu_custom_call.1} parent=47 // pred_region
          %s631 = sand.u32 %s98, 1
          %s632 = scalar_lea.sflag [#allocation5], %s631
          %s633 = sand.u32 %s98, 1
          %s634 = smul.addr %s633, 16
          %s635 = scalar_lea.vmem [#allocation8], %s634
          %636 = dma.done %s632, 256
        $region52: #{tpu_custom_call.1} parent=47 // pred_fallthru
          _
      $region48: #{tpu_custom_call.1} parent=5 // pred_fallthru
        _
    $region6: #{tpu_custom_call.1} parent=1 // loop_footer
      %s20 = sadd.s32 1, %s16
    $region7: #{tpu_custom_call.1} parent=1 // loop_footer_branch
      %15 = sbr.rel target = $region3
    $region8: #{tpu_custom_call.1} parent=1 // loop_exit
      _
    %637 = vsyncpa [#allocation4], 1
    %s638 = scalar_lea.sflag [#allocation4], 1
    %639 = vsyncpa %s638, 1
    %640 = vsyncpa [#allocation7], 1
    %641 = vsyncpa [#allocation5], 1
    %s642 = scalar_lea.sflag [#allocation5], 1
    %643 = vsyncpa %s642, 1

</llo_original>
